<compile_context>
chip_gen: v6e
topology: v6e:2x2x1
jax: 0.10.0
libtpu: 0.0.40
codegen_flags: <defaults>
</compile_context>

<pallas_src>
import jax
import jax.numpy as jnp
from jax.experimental import pallas as pl
from jax.experimental.pallas import tpu as pltpu

BN_EPS = 1e-5
_MAX_TILE_HW = 8192          # absolute lane-tile ceiling (amortization plateaus well below)
_VMEM_FALLBACK = 64 * 1024 * 1024   # conservative default: v7x per-TC VMEM


def _vmem_capacity_bytes() -> int:
    try:
        info = pltpu.get_tpu_info()
        cap = int(getattr(info, "vmem_capacity_bytes", 0))
        if cap > 0:
            return cap
    except Exception:
        pass
    return _VMEM_FALLBACK


def _pick_tile(hw: int, cin: int, cout: int, itemsize: int, vmem_cap: int) -> int:
    """Lane-axis tile for the streaming path, sized against the VMEM budget."""
    if hw <= 128:
        return hw
    # Double-buffered x block + out block bytes per lane column (pass 2 dominates).
    bytes_per_col = 2 * (cin + cout) * itemsize
    budget = int(0.40 * vmem_cap)
    cap = (budget // max(bytes_per_col, 1)) // 128 * 128
    cap = max(128, min(_MAX_TILE_HW, cap))
    if hw <= cap:
        return hw                      # full row (allowed even if not /128)
    for t in range(cap, 127, -128):    # largest /128 divisor of hw under the cap
        if hw % t == 0:
            return t
    return cap                         # no clean divisor: cdiv grid + in-kernel mask


# --------------------------------------------------------------------------- #
# Fused single-pass kernel (X + OUT resident in VMEM)
# --------------------------------------------------------------------------- #
def _fused_kernel(wt_ref, gamma_ref, beta_ref, x_ref, o_ref):
    nb, cin, hw = x_ref.shape
    mf = jnp.float32(nb * hw)

    def stats_body(ni, carry):
        g, s = carry
        xi = x_ref[ni]                                     # (Cin, HW), native dtype
        g = g + jax.lax.dot_general(                       # contract on lanes: no x.T
            xi, xi, dimension_numbers=(((1,), (1,)), ((), ())),
            preferred_element_type=jnp.float32)
        s = s + jnp.sum(xi.astype(jnp.float32), axis=1, keepdims=True)
        return g, s

    gram, csum = jax.lax.fori_loop(
        0, nb, stats_body,
        (jnp.zeros((cin, cin), jnp.float32), jnp.zeros((cin, 1), jnp.float32)))

    wt = wt_ref[...]                                       # (Cout, Cin) f32
    mean = jnp.dot(wt, csum, preferred_element_type=jnp.float32) / mf
    ey2 = jnp.sum(jnp.dot(wt, gram, preferred_element_type=jnp.float32) * wt,
                  axis=1, keepdims=True) / mf
    var = jnp.maximum(ey2 - mean * mean, 0.0)              # clamp: f32 cancellation
    scale = gamma_ref[...] * jax.lax.rsqrt(var + BN_EPS)
    shift = beta_ref[...] - mean * scale
    wts = (wt * scale).astype(x_ref.dtype)                 # native-dtype MXU path

    def out_body(ni, carry):
        y = jnp.dot(wts, x_ref[ni], preferred_element_type=jnp.float32) + shift
        o_ref[ni] = jnp.clip(y, -1.0, 1.0).astype(o_ref.dtype)
        return carry

    jax.lax.fori_loop(0, nb, out_body, 0)


# --------------------------------------------------------------------------- #
# Streaming two-pass kernels
# --------------------------------------------------------------------------- #
def _make_stats_kernel(hw_total: int, tile_hw: int):
    needs_mask = (hw_total % tile_hw) != 0

    def kernel(x_ref, gram_ref, csum_ref):
        # x_ref: (Cin, tile_hw) slab of image `ni` (lane-dense).
        # gram_ref: (Cin, Cin), csum_ref: (Cin, 1) -- per-batch partial accumulators.
        ti = pl.program_id(1)

        @pl.when(ti == 0)
        def _():
            gram_ref[...] = jnp.zeros_like(gram_ref)
            csum_ref[...] = jnp.zeros_like(csum_ref)

        x = x_ref[...]
        if needs_mask:  # last (partial) tile: zero the out-of-range lanes
            col = jax.lax.broadcasted_iota(jnp.int32, x.shape, 1)
            valid = hw_total - ti * tile_hw
            x = jnp.where(col < valid, x, jnp.zeros_like(x))

        gram_ref[...] += jax.lax.dot_general(              # contract on lanes: no x.T
            x, x, dimension_numbers=(((1,), (1,)), ((), ())),
            preferred_element_type=jnp.float32)
        csum_ref[...] += jnp.sum(x.astype(jnp.float32), axis=1, keepdims=True)

    return kernel


def _main_kernel(wt_ref, shift_ref, x_ref, o_ref):
    # wt_ref: (Cout, Cin) BN-folded weight (same dtype as x); shift_ref: (Cout,1) f32
    # x_ref: (Cin, tile_hw); o_ref: (Cout, tile_hw) -- spatial on the lane axis.
    y = jnp.dot(wt_ref[...], x_ref[...], preferred_element_type=jnp.float32)
    y = y + shift_ref[...]
    o_ref[...] = jnp.clip(y, -1.0, 1.0).astype(o_ref.dtype)


# --------------------------------------------------------------------------- #
# Wrapper
# --------------------------------------------------------------------------- #
def fp_tconv_bn_hardtanh(x_nchw, weight, gamma, beta, *, force_streaming=False):
    """x_nchw: (N, Cin, H, W); weight: (Cin, Cout, 1, 1); gamma/beta: (Cout,)."""
    n, cin, h, w = x_nchw.shape
    assert weight.shape[2] == 1 and weight.shape[3] == 1, "only 1x1 tconv implemented"
    cout = weight.shape[1]
    hw = h * w

    x3d = x_nchw.reshape(n, cin, hw)                 # free view of NCHW
    wt = weight.reshape(cin, cout).astype(jnp.float32).T      # (Cout, Cin)
    gamma_c = gamma.reshape(cout, 1).astype(jnp.float32)
    beta_c = beta.reshape(cout, 1).astype(jnp.float32)

    vmem_cap = _vmem_capacity_bytes()
    vmem_limit = min(int(0.70 * vmem_cap), 100 * 1024 * 1024)
    itemsize = x_nchw.dtype.itemsize
    x_bytes = n * cin * hw * itemsize
    out_bytes = n * cout * hw * itemsize

    # ---- fused single-pass path: one HBM read of X -------------------------
    if (not force_streaming) and (x_bytes + out_bytes + (1 << 16) <= int(0.40 * vmem_cap)):
        try:
            out3d = pl.pallas_call(
                _fused_kernel,
                out_shape=jax.ShapeDtypeStruct((n, cout, hw), x_nchw.dtype),
                compiler_params=pltpu.CompilerParams(vmem_limit_bytes=vmem_limit),
            )(wt, gamma_c, beta_c, x3d)
            return out3d.reshape(n, cout, h, w)
        except Exception:
            pass  # rare lowering hiccup on this shape/generation -> streaming fallback

    # ---- streaming path ------------------------------------------------------
    tile_hw = _pick_tile(hw, cin, cout, itemsize, vmem_cap)
    n_tiles = pl.cdiv(hw, tile_hw)

    # pass 1: per-batch partial Gram + column sums (batch axis parallel -> megacore)
    gram_p, csum_p = pl.pallas_call(
        _make_stats_kernel(hw, tile_hw),
        out_shape=(jax.ShapeDtypeStruct((n, cin, cin), jnp.float32),
                   jax.ShapeDtypeStruct((n, cin, 1), jnp.float32)),
        grid=(n, n_tiles),
        in_specs=[pl.BlockSpec((None, cin, tile_hw), lambda ni, ti: (ni, 0, ti))],
        out_specs=(pl.BlockSpec((None, cin, cin), lambda ni, ti: (ni, 0, 0)),
                   pl.BlockSpec((None, cin, 1), lambda ni, ti: (ni, 0, 0))),
        compiler_params=pltpu.CompilerParams(
            dimension_semantics=("parallel", "arbitrary"),
            vmem_limit_bytes=vmem_limit),
    )(x3d)
    gram = jnp.sum(gram_p, axis=0)
    csum = jnp.sum(csum_p, axis=0)

    # tiny per-channel BN fold (Cout elements; plain JAX)
    mf = jnp.float32(n * hw)
    mean = (wt @ csum) / mf
    ey2 = jnp.sum((wt @ gram) * wt, axis=1, keepdims=True) / mf
    var = jnp.maximum(ey2 - mean * mean, 0.0)        # clamp against f32 cancellation
    scale = gamma_c * jax.lax.rsqrt(var + BN_EPS)
    shift = beta_c - mean * scale
    wt_scaled = wt * scale
    if jnp.issubdtype(x_nchw.dtype, jnp.floating):
        wt_scaled = wt_scaled.astype(x_nchw.dtype)   # bf16 stays bf16 into the MXU

    # pass 2: matmul + affine + hardtanh, tiled & pipelined over (N, HW-tiles)
    out3d = pl.pallas_call(
        _main_kernel,
        out_shape=jax.ShapeDtypeStruct((n, cout, hw), x_nchw.dtype),
        grid=(n, n_tiles),
        in_specs=[pl.BlockSpec((cout, cin), lambda ni, ti: (0, 0)),
                  pl.BlockSpec((cout, 1), lambda ni, ti: (0, 0)),
                  pl.BlockSpec((None, cin, tile_hw), lambda ni, ti: (ni, 0, ti))],
        out_specs=pl.BlockSpec((None, cout, tile_hw), lambda ni, ti: (ni, 0, ti)),
        compiler_params=pltpu.CompilerParams(
            dimension_semantics=("parallel", "parallel"),
            vmem_limit_bytes=vmem_limit),
    )(wt_scaled, shift, x3d)

    return out3d.reshape(n, cout, h, w)


# --------------------------------------------------------------------------- #
if __name__ == "__main__":
    key = jax.random.PRNGKey(0)
    k_x, k_w = jax.random.split(key)

    # Small shapes consistent with the module defaults.
    N, Cin, Cout, H, W = 2, 4, 8, 16, 16

    x = jax.random.normal(k_x, (N, Cin, H, W), dtype=jnp.float32)
    # ConvTranspose2d weight shape: (in_channels, out_channels, kH, kW)
    weight = jax.random.normal(k_w, (Cin, Cout, 1, 1), dtype=jnp.float32) * 0.1
    # BatchNorm2d(affine=True) init: gamma=1, beta=0.
    gamma = jnp.ones((Cout,), dtype=jnp.float32)
    beta = jnp.zeros((Cout,), dtype=jnp.float32)

    # Pure-JAX reference (1x1 tconv -> training-mode BN (biased var) -> hardtanh).
    w2d = weight.reshape(Cin, Cout)
    y_ref = jnp.einsum("nchw,cd->ndhw", x, w2d)
    mu = jnp.mean(y_ref, axis=(0, 2, 3), keepdims=True)
    va = jnp.var(y_ref, axis=(0, 2, 3), keepdims=True)  # biased
    ref = (y_ref - mu) * jax.lax.rsqrt(va + BN_EPS)
    ref = ref * gamma[None, :, None, None] + beta[None, :, None, None]
    ref = jnp.clip(ref, -1.0, 1.0)

    # Fused single-pass path (default for these small shapes).
    out = fp_tconv_bn_hardtanh(x, weight, gamma, beta)
    jax.block_until_ready(out)
    assert out.shape == (N, Cout, H, W)
    err = float(jnp.max(jnp.abs(out - ref)))
    assert err < 5e-2, f"fused path max abs err {err}"

    # Streaming two-pass path (exercised explicitly for coverage).
    out_s = fp_tconv_bn_hardtanh(x, weight, gamma, beta, force_streaming=True)
    jax.block_until_ready(out_s)
    err_s = float(jnp.max(jnp.abs(out_s - ref)))
    assert err_s < 5e-2, f"streaming path max abs err {err_s}"

    print("KERNEL_OK")
</pallas_src>

<mosaic_0001>
module attributes {stable_mosaic.version = 11 : i64} {
  func.func @_fused_kernel(%arg0: memref<8x4xf32, #tpu.memory_space<vmem>>, %arg1: memref<8x1xf32, #tpu.memory_space<vmem>>, %arg2: memref<8x1xf32, #tpu.memory_space<vmem>>, %arg3: memref<2x4x256xf32, #tpu.memory_space<vmem>>, %arg4: memref<2x8x256xf32, #tpu.memory_space<vmem>>) attributes {dimension_semantics = [], scalar_prefetch = 0 : i64, scratch_operands = 0 : i64, tpu.core_type = #tpu.core_type<tc>} {
    %cst = arith.constant 0.000000e+00 : f32
    %0 = vector.broadcast %cst : f32 to vector<4x4xf32>
    %cst_0 = arith.constant 0.000000e+00 : f32
    %1 = vector.broadcast %cst_0 : f32 to vector<4x1xf32>
    %c0_i32 = arith.constant 0 : i32
    %c2_i32 = arith.constant 2 : i32
    %2 = arith.addi %c0_i32, %c2_i32 : i32
    %c1_i32 = arith.constant 1 : i32
    %3:2 = scf.for %arg5 = %c0_i32 to %2 step %c1_i32 iter_args(%arg6 = %0, %arg7 = %1) -> (vector<4x4xf32>, vector<4x1xf32>)  : i32 {
      %29 = arith.index_cast %arg5 : i32 to index
      %c0_18 = arith.constant 0 : index
      %c0_19 = arith.constant 0 : index
      %30 = vector.load %arg3[%29, %c0_18, %c0_19] : memref<2x4x256xf32, #tpu.memory_space<vmem>>, vector<1x4x256xf32>
      %31 = vector.shape_cast %30 : vector<1x4x256xf32> to vector<4x256xf32>
      %cst_20 = arith.constant dense<0.000000e+00> : vector<4x4xf32>
      %32 = tpu.matmul %31, %31, %cst_20 {dimension_numbers = #tpu.dot_dimension_numbers<[1], [1], [0], [0], [0, 0, 1, 0], [], []>} : vector<4x256xf32>, vector<4x256xf32>, vector<4x4xf32> -> vector<4x4xf32>
      %33 = arith.addf %arg6, %32 : vector<4x4xf32>
      %cst_21 = arith.constant dense<0.000000e+00> : vector<4xf32>
      %34 = vector.multi_reduction <add>, %31, %cst_21 [1] : vector<4x256xf32> to vector<4xf32>
      %35 = vector.shape_cast %34 : vector<4xf32> to vector<4x1xf32>
      %36 = arith.addf %arg7, %35 : vector<4x1xf32>
      scf.yield %33, %36 : vector<4x4xf32>, vector<4x1xf32>
    }
    %c2_i32_1 = arith.constant 2 : i32
    %c0 = arith.constant 0 : index
    %c0_2 = arith.constant 0 : index
    %4 = vector.load %arg0[%c0, %c0_2] : memref<8x4xf32, #tpu.memory_space<vmem>>, vector<8x4xf32>
    %cst_3 = arith.constant dense<0.000000e+00> : vector<8x1xf32>
    %5 = tpu.matmul %4, %3#1, %cst_3 {dimension_numbers = #tpu.dot_dimension_numbers<[1], [0], [0], [1], [0, 0, 1, 1], [], []>} : vector<8x4xf32>, vector<4x1xf32>, vector<8x1xf32> -> vector<8x1xf32>
    %cst_4 = arith.constant 5.120000e+02 : f32
    %6 = vector.broadcast %cst_4 : f32 to vector<8x1xf32>
    %7 = arith.divf %5, %6 : vector<8x1xf32>
    %cst_5 = arith.constant dense<0.000000e+00> : vector<8x4xf32>
    %8 = tpu.matmul %4, %3#0, %cst_5 {dimension_numbers = #tpu.dot_dimension_numbers<[1], [0], [0], [1], [0, 0, 1, 1], [], []>} : vector<8x4xf32>, vector<4x4xf32>, vector<8x4xf32> -> vector<8x4xf32>
    %9 = arith.mulf %8, %4 : vector<8x4xf32>
    %cst_6 = arith.constant dense<0.000000e+00> : vector<8xf32>
    %10 = vector.multi_reduction <add>, %9, %cst_6 [1] : vector<8x4xf32> to vector<8xf32>
    %11 = vector.shape_cast %10 : vector<8xf32> to vector<8x1xf32>
    %cst_7 = arith.constant 5.120000e+02 : f32
    %12 = vector.broadcast %cst_7 : f32 to vector<8x1xf32>
    %13 = arith.divf %11, %12 : vector<8x1xf32>
    %14 = arith.mulf %7, %7 : vector<8x1xf32>
    %15 = arith.subf %13, %14 : vector<8x1xf32>
    %cst_8 = arith.constant 0.000000e+00 : f32
    %16 = vector.broadcast %cst_8 : f32 to vector<8x1xf32>
    %17 = arith.maximumf %15, %16 : vector<8x1xf32>
    %c0_9 = arith.constant 0 : index
    %c0_10 = arith.constant 0 : index
    %18 = vector.load %arg1[%c0_9, %c0_10] : memref<8x1xf32, #tpu.memory_space<vmem>>, vector<8x1xf32>
    %cst_11 = arith.constant 9.99999974E-6 : f32
    %19 = vector.broadcast %cst_11 : f32 to vector<8x1xf32>
    %20 = arith.addf %17, %19 : vector<8x1xf32>
    %21 = math.rsqrt %20 : vector<8x1xf32>
    %22 = arith.mulf %18, %21 : vector<8x1xf32>
    %c0_12 = arith.constant 0 : index
    %c0_13 = arith.constant 0 : index
    %23 = vector.load %arg2[%c0_12, %c0_13] : memref<8x1xf32, #tpu.memory_space<vmem>>, vector<8x1xf32>
    %24 = arith.mulf %7, %22 : vector<8x1xf32>
    %25 = arith.subf %23, %24 : vector<8x1xf32>
    %26 = vector.broadcast %22 : vector<8x1xf32> to vector<8x4xf32>
    %27 = arith.mulf %4, %26 : vector<8x4xf32>
    %c0_i32_14 = arith.constant 0 : i32
    %c2_i32_15 = arith.constant 2 : i32
    %28 = arith.addi %c0_i32_14, %c2_i32_15 : i32
    %c1_i32_16 = arith.constant 1 : i32
    scf.for %arg5 = %c0_i32_14 to %28 step %c1_i32_16  : i32 {
      %29 = arith.index_cast %arg5 : i32 to index
      %c0_18 = arith.constant 0 : index
      %c0_19 = arith.constant 0 : index
      %30 = vector.load %arg3[%29, %c0_18, %c0_19] : memref<2x4x256xf32, #tpu.memory_space<vmem>>, vector<1x4x256xf32>
      %31 = vector.shape_cast %30 : vector<1x4x256xf32> to vector<4x256xf32>
      %cst_20 = arith.constant dense<0.000000e+00> : vector<8x256xf32>
      %32 = tpu.matmul %27, %31, %cst_20 {dimension_numbers = #tpu.dot_dimension_numbers<[1], [0], [0], [1], [0, 0, 1, 1], [], []>} : vector<8x4xf32>, vector<4x256xf32>, vector<8x256xf32> -> vector<8x256xf32>
      %33 = vector.broadcast %25 : vector<8x1xf32> to vector<8x256xf32>
      %34 = arith.addf %32, %33 : vector<8x256xf32>
      %cst_21 = arith.constant -1.000000e+00 : f32
      %cst_22 = arith.constant 1.000000e+00 : f32
      %35 = vector.broadcast %cst_21 : f32 to vector<8x256xf32>
      %36 = arith.maximumf %35, %34 : vector<8x256xf32>
      %37 = vector.broadcast %cst_22 : f32 to vector<8x256xf32>
      %38 = arith.minimumf %37, %36 : vector<8x256xf32>
      %39 = arith.index_cast %arg5 : i32 to index
      %c0_23 = arith.constant 0 : index
      %c0_24 = arith.constant 0 : index
      %40 = vector.load %arg4[%39, %c0_23, %c0_24] : memref<2x8x256xf32, #tpu.memory_space<vmem>>, vector<1x8x256xf32>
      %41 = vector.shape_cast %40 : vector<1x8x256xf32> to vector<8x256xf32>
      %42 = vector.shape_cast %38 : vector<8x256xf32> to vector<1x8x256xf32>
      tpu.vector_store %arg4[%39, %c0_23, %c0_24], %42 {strides = array<i32>} : memref<2x8x256xf32, #tpu.memory_space<vmem>>, vector<1x8x256xf32>,
    }
    %c2_i32_17 = arith.constant 2 : i32
    return
  }
}

module attributes {stable_mosaic.version = 11 : i64} {
  func.func @kernel(%arg0: i32, %arg1: i32, %arg2: memref<1x4x256xf32, #tpu.memory_space<vmem>>, %arg3: memref<1x4x4xf32, #tpu.memory_space<vmem>>, %arg4: memref<1x4x1xf32, #tpu.memory_space<vmem>>) attributes {dimension_semantics = [#tpu.dimension_semantics<parallel>, #tpu.dimension_semantics<arbitrary>], iteration_bounds = array<i64: 2, 1>, scalar_prefetch = 0 : i64, scratch_operands = 0 : i64, tpu.core_type = #tpu.core_type<tc>, window_params = [{transform_indices = @transform_0, window_bounds = array<i64: 1, 4, 256>}, {transform_indices = @transform_1, window_bounds = array<i64: 1, 4, 4>}, {transform_indices = @transform_2, window_bounds = array<i64: 1, 4, 1>}]} {
    %c0_i32 = arith.constant 0 : i32
    %0 = arith.cmpi eq, %arg1, %c0_i32 : i32
    %1 = arith.extui %0 : i1 to i32
    %c0_i32_0 = arith.constant 0 : i32
    %2 = arith.cmpi ne, %1, %c0_i32_0 : i32
    scf.if %2 {
      %cst_16 = arith.constant 0.000000e+00 : f32
      %20 = vector.broadcast %cst_16 : f32 to vector<4x4xf32>
      %c0_17 = arith.constant 0 : index
      %c0_18 = arith.constant 0 : index
      %c0_19 = arith.constant 0 : index
      %21 = vector.load %arg3[%c0_17, %c0_18, %c0_19] : memref<1x4x4xf32, #tpu.memory_space<vmem>>, vector<1x4x4xf32>
      %22 = vector.shape_cast %21 : vector<1x4x4xf32> to vector<4x4xf32>
      %23 = vector.shape_cast %20 : vector<4x4xf32> to vector<1x4x4xf32>
      tpu.vector_store %arg3[%c0_17, %c0_18, %c0_19], %23 {strides = array<i32>} : memref<1x4x4xf32, #tpu.memory_space<vmem>>, vector<1x4x4xf32>,
      %cst_20 = arith.constant 0.000000e+00 : f32
      %24 = vector.broadcast %cst_20 : f32 to vector<4x1xf32>
      %c0_21 = arith.constant 0 : index
      %c0_22 = arith.constant 0 : index
      %c0_23 = arith.constant 0 : index
      %25 = vector.load %arg4[%c0_21, %c0_22, %c0_23] : memref<1x4x1xf32, #tpu.memory_space<vmem>>, vector<1x4x1xf32>
      %26 = vector.shape_cast %25 : vector<1x4x1xf32> to vector<4x1xf32>
      %27 = vector.shape_cast %24 : vector<4x1xf32> to vector<1x4x1xf32>
      tpu.vector_store %arg4[%c0_21, %c0_22, %c0_23], %27 {strides = array<i32>} : memref<1x4x1xf32, #tpu.memory_space<vmem>>, vector<1x4x1xf32>,
    } else {
    }
    %c0 = arith.constant 0 : index
    %c0_1 = arith.constant 0 : index
    %c0_2 = arith.constant 0 : index
    %3 = vector.load %arg2[%c0, %c0_1, %c0_2] : memref<1x4x256xf32, #tpu.memory_space<vmem>>, vector<1x4x256xf32>
    %4 = vector.shape_cast %3 : vector<1x4x256xf32> to vector<4x256xf32>
    %c0_3 = arith.constant 0 : index
    %c0_4 = arith.constant 0 : index
    %c0_5 = arith.constant 0 : index
    %5 = vector.load %arg3[%c0_3, %c0_4, %c0_5] : memref<1x4x4xf32, #tpu.memory_space<vmem>>, vector<1x4x4xf32>
    %6 = vector.shape_cast %5 : vector<1x4x4xf32> to vector<4x4xf32>
    %cst = arith.constant dense<0.000000e+00> : vector<4x4xf32>
    %7 = tpu.matmul %4, %4, %cst {dimension_numbers = #tpu.dot_dimension_numbers<[1], [1], [0], [0], [0, 0, 1, 0], [], []>} : vector<4x256xf32>, vector<4x256xf32>, vector<4x4xf32> -> vector<4x4xf32>
    %8 = arith.addf %6, %7 : vector<4x4xf32>
    %c0_6 = arith.constant 0 : index
    %c0_7 = arith.constant 0 : index
    %c0_8 = arith.constant 0 : index
    %9 = vector.load %arg3[%c0_6, %c0_7, %c0_8] : memref<1x4x4xf32, #tpu.memory_space<vmem>>, vector<1x4x4xf32>
    %10 = vector.shape_cast %9 : vector<1x4x4xf32> to vector<4x4xf32>
    %11 = vector.shape_cast %8 : vector<4x4xf32> to vector<1x4x4xf32>
    tpu.vector_store %arg3[%c0_6, %c0_7, %c0_8], %11 {strides = array<i32>} : memref<1x4x4xf32, #tpu.memory_space<vmem>>, vector<1x4x4xf32>,
    %c0_9 = arith.constant 0 : index
    %c0_10 = arith.constant 0 : index
    %c0_11 = arith.constant 0 : index
    %12 = vector.load %arg4[%c0_9, %c0_10, %c0_11] : memref<1x4x1xf32, #tpu.memory_space<vmem>>, vector<1x4x1xf32>
    %13 = vector.shape_cast %12 : vector<1x4x1xf32> to vector<4x1xf32>
    %cst_12 = arith.constant dense<0.000000e+00> : vector<4xf32>
    %14 = vector.multi_reduction <add>, %4, %cst_12 [1] : vector<4x256xf32> to vector<4xf32>
    %15 = vector.shape_cast %14 : vector<4xf32> to vector<4x1xf32>
    %16 = arith.addf %13, %15 : vector<4x1xf32>
    %c0_13 = arith.constant 0 : index
    %c0_14 = arith.constant 0 : index
    %c0_15 = arith.constant 0 : index
    %17 = vector.load %arg4[%c0_13, %c0_14, %c0_15] : memref<1x4x1xf32, #tpu.memory_space<vmem>>, vector<1x4x1xf32>
    %18 = vector.shape_cast %17 : vector<1x4x1xf32> to vector<4x1xf32>
    %19 = vector.shape_cast %16 : vector<4x1xf32> to vector<1x4x1xf32>
    tpu.vector_store %arg4[%c0_13, %c0_14, %c0_15], %19 {strides = array<i32>} : memref<1x4x1xf32, #tpu.memory_space<vmem>>, vector<1x4x1xf32>,
    return
  }
  func.func @transform_0(%arg0: i32, %arg1: i32) -> (i32, i32, i32) {
    %c0_i32 = arith.constant 0 : i32
    %c0_i32_0 = arith.constant 0 : i32
    return %arg0, %c0_i32, %arg1 : i32, i32, i32
  }
  func.func @transform_1(%arg0: i32, %arg1: i32) -> (i32, i32, i32) {
    %c0_i32 = arith.constant 0 : i32
    %c0_i32_0 = arith.constant 0 : i32
    %c0_i32_1 = arith.constant 0 : i32
    return %arg0, %c0_i32, %c0_i32_0 : i32, i32, i32
  }
  func.func @transform_2(%arg0: i32, %arg1: i32) -> (i32, i32, i32) {
    %c0_i32 = arith.constant 0 : i32
    %c0_i32_0 = arith.constant 0 : i32
    %c0_i32_1 = arith.constant 0 : i32
    return %arg0, %c0_i32, %c0_i32_0 : i32, i32, i32
  }
}

</mosaic_0001>

<llo_original>
// kernel: tpu_custom_call.1
$region0: #{tpu_custom_call.1}
  #allocation0 [shape = 'u32[]', space=smem, size = 0x4, offset = 0x4, fixed_abs, tag = 'smem constant byte address 0x4 - core index']
  #allocation1 [shape = 'u32[144,128]{1,0:T(1,128)}', space=vmem, size = 0x12000, scoped, tag = 'internal scratch']
  %s0 = inlined_call_operand.vmem [shape: f32[8,4], index: 0, kind: input, shape index: {}]
  %s1 = inlined_call_operand.vmem [shape: f32[8,1], index: 1, kind: input, shape index: {}]
  %s2 = inlined_call_operand.vmem [shape: f32[8,1], index: 2, kind: input, shape index: {}]
  %s3 = inlined_call_operand.vmem [shape: f32[2,4,256], index: 3, kind: input, shape index: {}]
  %s4 = inlined_call_operand.hbm [shape: f32[2,8,256], index: 4, kind: output, shape index: {}]
  %s5 = sld [smem:[#allocation0]]
  $region40: #{tpu_custom_call.1} parent=0
    _
  %s7 = ssub.s32 1, %s5
  %s8 = scalar_select 0, %s7, %s5
  $region1: #{tpu_custom_call.1} parent=0
    #allocation2 [shape = 'u8[16384]{0}', space=vmem, size = 0x4000, scoped, tag = 'output window, operand 0, single buffered']
    #allocation3 [shape = 's32[1]{0}', space=sflag, size = 0x4, scoped, tag = 'scoped memory for tpu_custom_call.1']
    %9 = vsyncpa [#allocation3], 0
    // Predicated region
    $region2: #{tpu_custom_call.1} parent=1 // pred_check
      _
    $region3: #{tpu_custom_call.1} parent=1 // pred_check_branch
      %11 = sbr.rel (0) target = $region5
    $region4: #{tpu_custom_call.1} parent=1 // pred_region
      _
    $region5: #{tpu_custom_call.1} parent=1 // pred_fallthru
      _
    // Predicated region
    $region6: #{tpu_custom_call.1} parent=1 // pred_check
      _
    $region7: #{tpu_custom_call.1} parent=1 // pred_check_branch
      %13 = sbr.rel (0) target = $region9
    $region8: #{tpu_custom_call.1} parent=1 // pred_region
      _
    $region9: #{tpu_custom_call.1} parent=1 // pred_fallthru
      _
    // Predicated region
    $region10: #{tpu_custom_call.1} parent=1 // pred_check
      _
    $region11: #{tpu_custom_call.1} parent=1 // pred_check_branch
      %15 = sbr.rel (0) target = $region13
    $region12: #{tpu_custom_call.1} parent=1 // pred_region
      _
    $region13: #{tpu_custom_call.1} parent=1 // pred_fallthru
      _
    // Predicated region
    $region14: #{tpu_custom_call.1} parent=1 // pred_check
      _
    $region15: #{tpu_custom_call.1} parent=1 // pred_check_branch
      %17 = sbr.rel (0) target = $region17
    $region16: #{tpu_custom_call.1} parent=1 // pred_region
      _
    $region17: #{tpu_custom_call.1} parent=1 // pred_fallthru
      _
    loop: start=0, step=1, limit=2
    $region18: #{tpu_custom_call.1} parent=1 // loop_pre_header
      _
    $region19: #{tpu_custom_call.1} parent=1 // loop_header
      %s19 = sphi 0, %s23
      %p20 = scmp.ge.s32.totalorder %s19, 2
      %v24 = vphi 0.0, %v103
      %v25 = vphi 0.0, %v110
    $region20: #{tpu_custom_call.1} parent=1 // loop_header_branch
      %22 = sbr.rel (%p20) target = $region24
    $region21: #{tpu_custom_call.1} parent=1 // loop_body
      %s26 = smul.u32 %s19, 2
      %s27 = smul.addr %s26, 4
      %s28 = scalar_lea.vmem %s3, %s27
      %v29 = vld [vmem:[%s28] sm:$0xff]
      %v31 = vcombine.high %v29, %v29
      %33 = vmatprep.subr.mxu0 0.0
      %34 = vmatpush1.xpose.msra.mxu0 0.0
      %35 = vmatprep.subr.mxu0 0.0
      %36 = vmatpush1.xpose.msra.mxu0 0.0
      %37 = vmatprep.subr.mxu0 0.0
      %38 = vmatpush1.xpose.msra.mxu0 0.0
      %39 = vmatprep.subr.mxu0 0.0
      %40 = vmatpush1.xpose.msra.mxu0 0.0
      %41 = vmatprep.subr.mxu0 0.0
      %42 = vmatpush1.xpose.msra.mxu0 0.0
      %43 = vmatprep.subr.mxu0 0.0
      %44 = vmatpush1.xpose.msra.mxu0 0.0
      %45 = vmatprep.subr.mxu0 0.0
      %46 = vmatpush1.xpose.msra.mxu0 0.0
      %47 = vmatprep.subr.mxu0 0.0
      %48 = vmatpush1.xpose.msra.mxu0 0.0
      %49 = vmatprep.subr.mxu0 0.0
      %50 = vmatpush1.xpose.msra.mxu0 0.0
      %51 = vmatprep.subr.mxu0 0.0
      %52 = vmatpush1.xpose.msra.mxu0 0.0
      %53 = vmatprep.subr.mxu0 0.0
      %54 = vmatpush1.xpose.msra.mxu0 0.0
      %55 = vmatprep.subr.mxu0 0.0
      %56 = vmatpush1.xpose.msra.mxu0 0.0
      %57 = vmatprep.subr.mxu0 0.0
      %58 = vmatpush1.xpose.msra.mxu0 0.0
      %59 = vmatprep.subr.mxu0 0.0
      %60 = vmatpush1.xpose.msra.mxu0 0.0
      %61 = vmatprep.subr.mxu0 0.0
      %62 = vmatpush1.xpose.msra.mxu0 0.0
      %63 = vmatprep.subr.mxu0 %v31
      %64 = vmatpush1.xpose.msra.mxu0 %v29
      %65 = vmatprep.subr.mxu0 0.0
      %66 = vmatpush2.xpose.msra.mxu0 0.0
      %67 = vmatprep.subr.mxu0 0.0
      %68 = vmatpush2.xpose.msra.mxu0 0.0
      %69 = vmatprep.subr.mxu0 0.0
      %70 = vmatpush2.xpose.msra.mxu0 0.0
      %71 = vmatprep.subr.mxu0 0.0
      %72 = vmatpush2.xpose.msra.mxu0 0.0
      %73 = vmatprep.subr.mxu0 0.0
      %74 = vmatpush2.xpose.msra.mxu0 0.0
      %75 = vmatprep.subr.mxu0 0.0
      %76 = vmatpush2.xpose.msra.mxu0 0.0
      %77 = vmatprep.subr.mxu0 0.0
      %78 = vmatpush2.xpose.msra.mxu0 0.0
      %79 = vmatprep.subr.mxu0 0.0
      %80 = vmatpush2.xpose.msra.mxu0 0.0
      %81 = vmatprep.subr.mxu0 0.0
      %82 = vmatpush2.xpose.msra.mxu0 0.0
      %83 = vmatprep.subr.mxu0 0.0
      %84 = vmatpush2.xpose.msra.mxu0 0.0
      %85 = vmatprep.subr.mxu0 0.0
      %86 = vmatpush2.xpose.msra.mxu0 0.0
      %87 = vmatprep.subr.mxu0 0.0
      %88 = vmatpush2.xpose.msra.mxu0 0.0
      %89 = vmatprep.subr.mxu0 0.0
      %90 = vmatpush2.xpose.msra.mxu0 0.0
      %91 = vmatprep.subr.mxu0 0.0
      %92 = vmatpush2.xpose.msra.mxu0 0.0
      %93 = vmatprep.subr.mxu0 0.0
      %94 = vmatpush2.xpose.msra.mxu0 0.0
      %95 = vmatprep.subr.mxu0 0.0
      %96 = vmatpush2.xpose.msra.mxu0 0.0
      %97 = vmatprep.mubr.f32.mxu0 %v31
      %98 = vmatmul.mubr.f32.gmra.mxu0 %v29
      %v99 = vpop.f32.mrf.mxu0
      %v100 = vadd.f32 0.0, %v99
      %v101 = vpop.f32.mrf.mxu0
      %102 = vdwg.mxu0
      %v103 = vadd.f32 %v24, %v100
      %vm104 = vcmask 1043456
      %v105 = vsel %vm104, %v29, 0.0
      %v106 = vsel %vm104, %v31, 0.0
      %v107 = vadd.f32 %v105, %v106
      %108 = vadd.xlane.f32.xlu0 %v107
      %v109 = vpop.xlane.xlu0 %108
      %v110 = vadd.f32 %v25, %v109
    $region22: #{tpu_custom_call.1} parent=1 // loop_footer
      %s23 = sadd.s32 1, %s19
    $region23: #{tpu_custom_call.1} parent=1 // loop_footer_branch
      %18 = sbr.rel target = $region19
    $region24: #{tpu_custom_call.1} parent=1 // loop_exit
      _
    %v111 = vld [vmem:[%s0] sm:$0xff]
    %vm112 = vcmask 31744
    %v114 = vsel %vm112, %v111, 0
    %vm116 = vcmask 1043456
    %v118 = vsel %vm116, %v25, 0
    %120 = vmatprep.subr.mxu0 0.0
    %121 = vmatpush1.msra.mxu0 0.0
    %122 = vmatprep.subr.mxu0 0.0
    %123 = vmatpush1.msra.mxu0 0.0
    %124 = vmatprep.subr.mxu0 0.0
    %125 = vmatpush1.msra.mxu0 0.0
    %126 = vmatprep.subr.mxu0 0.0
    %127 = vmatpush1.msra.mxu0 0.0
    %128 = vmatprep.subr.mxu0 0.0
    %129 = vmatpush1.msra.mxu0 0.0
    %130 = vmatprep.subr.mxu0 0.0
    %131 = vmatpush1.msra.mxu0 0.0
    %132 = vmatprep.subr.mxu0 0.0
    %133 = vmatpush1.msra.mxu0 0.0
    %134 = vmatprep.subr.mxu0 0.0
    %135 = vmatpush1.msra.mxu0 0.0
    %136 = vmatprep.subr.mxu0 0.0
    %137 = vmatpush1.msra.mxu0 0.0
    %138 = vmatprep.subr.mxu0 0.0
    %139 = vmatpush1.msra.mxu0 0.0
    %140 = vmatprep.subr.mxu0 0.0
    %141 = vmatpush1.msra.mxu0 0.0
    %142 = vmatprep.subr.mxu0 0.0
    %143 = vmatpush1.msra.mxu0 0.0
    %144 = vmatprep.subr.mxu0 0.0
    %145 = vmatpush1.msra.mxu0 0.0
    %146 = vmatprep.subr.mxu0 0.0
    %147 = vmatpush1.msra.mxu0 0.0
    %148 = vmatprep.subr.mxu0 0.0
    %149 = vmatpush1.msra.mxu0 0.0
    %150 = vmatprep.subr.mxu0 0.0
    %151 = vmatpush1.msra.mxu0 %v118
    %152 = vmatprep.subr.mxu0 0.0
    %153 = vmatpush2.msra.mxu0 0.0
    %154 = vmatprep.subr.mxu0 0.0
    %155 = vmatpush2.msra.mxu0 0.0
    %156 = vmatprep.subr.mxu0 0.0
    %157 = vmatpush2.msra.mxu0 0.0
    %158 = vmatprep.subr.mxu0 0.0
    %159 = vmatpush2.msra.mxu0 0.0
    %160 = vmatprep.subr.mxu0 0.0
    %161 = vmatpush2.msra.mxu0 0.0
    %162 = vmatprep.subr.mxu0 0.0
    %163 = vmatpush2.msra.mxu0 0.0
    %164 = vmatprep.subr.mxu0 0.0
    %165 = vmatpush2.msra.mxu0 0.0
    %166 = vmatprep.subr.mxu0 0.0
    %167 = vmatpush2.msra.mxu0 0.0
    %168 = vmatprep.subr.mxu0 0.0
    %169 = vmatpush2.msra.mxu0 0.0
    %170 = vmatprep.subr.mxu0 0.0
    %171 = vmatpush2.msra.mxu0 0.0
    %172 = vmatprep.subr.mxu0 0.0
    %173 = vmatpush2.msra.mxu0 0.0
    %174 = vmatprep.subr.mxu0 0.0
    %175 = vmatpush2.msra.mxu0 0.0
    %176 = vmatprep.subr.mxu0 0.0
    %177 = vmatpush2.msra.mxu0 0.0
    %178 = vmatprep.subr.mxu0 0.0
    %179 = vmatpush2.msra.mxu0 0.0
    %180 = vmatprep.subr.mxu0 0.0
    %181 = vmatpush2.msra.mxu0 0.0
    %182 = vmatprep.subr.mxu0 0.0
    %183 = vmatpush2.msra.mxu0 0.0
    %184 = vmatprep.mubr.f32.mxu0 0.0
    %185 = vmatmul.mubr.f32.gmra.mxu0 %v114
    %v186 = vpop.f32.mrf.mxu0
    %v187 = vadd.f32 0.0, %v186
    %v188 = vpop.f32.mrf.mxu0
    %189 = vdwg.mxu0
    %v190 = vrcp.pop 512.0
    %v191 = vmul.f32 %v187, %v190
    %v193 = vsel %vm116, %v24, 0
    %195 = vmatprep.subr.mxu0 0.0
    %196 = vmatpush1.msra.mxu0 0.0
    %197 = vmatprep.subr.mxu0 0.0
    %198 = vmatpush1.msra.mxu0 0.0
    %199 = vmatprep.subr.mxu0 0.0
    %200 = vmatpush1.msra.mxu0 0.0
    %201 = vmatprep.subr.mxu0 0.0
    %202 = vmatpush1.msra.mxu0 0.0
    %203 = vmatprep.subr.mxu0 0.0
    %204 = vmatpush1.msra.mxu0 0.0
    %205 = vmatprep.subr.mxu0 0.0
    %206 = vmatpush1.msra.mxu0 0.0
    %207 = vmatprep.subr.mxu0 0.0
    %208 = vmatpush1.msra.mxu0 0.0
    %209 = vmatprep.subr.mxu0 0.0
    %210 = vmatpush1.msra.mxu0 0.0
    %211 = vmatprep.subr.mxu0 0.0
    %212 = vmatpush1.msra.mxu0 0.0
    %213 = vmatprep.subr.mxu0 0.0
    %214 = vmatpush1.msra.mxu0 0.0
    %215 = vmatprep.subr.mxu0 0.0
    %216 = vmatpush1.msra.mxu0 0.0
    %217 = vmatprep.subr.mxu0 0.0
    %218 = vmatpush1.msra.mxu0 0.0
    %219 = vmatprep.subr.mxu0 0.0
    %220 = vmatpush1.msra.mxu0 0.0
    %221 = vmatprep.subr.mxu0 0.0
    %222 = vmatpush1.msra.mxu0 0.0
    %223 = vmatprep.subr.mxu0 0.0
    %224 = vmatpush1.msra.mxu0 0.0
    %225 = vmatprep.subr.mxu0 0.0
    %226 = vmatpush1.msra.mxu0 %v193
    %227 = vmatprep.subr.mxu0 0.0
    %228 = vmatpush2.msra.mxu0 0.0
    %229 = vmatprep.subr.mxu0 0.0
    %230 = vmatpush2.msra.mxu0 0.0
    %231 = vmatprep.subr.mxu0 0.0
    %232 = vmatpush2.msra.mxu0 0.0
    %233 = vmatprep.subr.mxu0 0.0
    %234 = vmatpush2.msra.mxu0 0.0
    %235 = vmatprep.subr.mxu0 0.0
    %236 = vmatpush2.msra.mxu0 0.0
    %237 = vmatprep.subr.mxu0 0.0
    %238 = vmatpush2.msra.mxu0 0.0
    %239 = vmatprep.subr.mxu0 0.0
    %240 = vmatpush2.msra.mxu0 0.0
    %241 = vmatprep.subr.mxu0 0.0
    %242 = vmatpush2.msra.mxu0 0.0
    %243 = vmatprep.subr.mxu0 0.0
    %244 = vmatpush2.msra.mxu0 0.0
    %245 = vmatprep.subr.mxu0 0.0
    %246 = vmatpush2.msra.mxu0 0.0
    %247 = vmatprep.subr.mxu0 0.0
    %248 = vmatpush2.msra.mxu0 0.0
    %249 = vmatprep.subr.mxu0 0.0
    %250 = vmatpush2.msra.mxu0 0.0
    %251 = vmatprep.subr.mxu0 0.0
    %252 = vmatpush2.msra.mxu0 0.0
    %253 = vmatprep.subr.mxu0 0.0
    %254 = vmatpush2.msra.mxu0 0.0
    %255 = vmatprep.subr.mxu0 0.0
    %256 = vmatpush2.msra.mxu0 0.0
    %257 = vmatprep.subr.mxu0 0.0
    %258 = vmatpush2.msra.mxu0 0.0
    %259 = vmatprep.mubr.f32.mxu0 0.0
    %260 = vmatmul.mubr.f32.gmra.mxu0 %v114
    %v261 = vpop.f32.mrf.mxu0
    %v262 = vadd.f32 0.0, %v261
    %v263 = vpop.f32.mrf.mxu0
    %264 = vdwg.mxu0
    %v265 = vmul.f32 %v262, %v111
    %v266 = vsel %vm112, %v265, 0.0
    %267 = vadd.xlane.f32.xlu0 %v266
    %v268 = vpop.xlane.xlu0 %267
    %v269 = vmul.f32 %v268, %v190
    %v270 = vmul.f32 %v191, %v191
    %v271 = vsub.f32 %v269, %v270
    %v272 = vmax.f32 %v271, 0.0
    %v273 = vld [vmem:[%s1] sm:$0xff]
    %v274 = vadd.f32 %v272, 1e-05
    %v275 = vrsqrt.pop %v274
    %v276 = vmul.f32 %v273, %v275
    %v277 = vld [vmem:[%s2] sm:$0xff]
    %v278 = vmul.f32 %v191, %v276
    %v279 = vsub.f32 %v277, %v278
    %281 = vset.pattern.permute.xlu0 0
    %282 = vperm.xlu0 %281, %v276
    %v283 = vpop.permute.xlu0 %282
    %v285 = vmul.f32 %v111, %v283
    loop: start=0, step=1, limit=2
    $region25: #{tpu_custom_call.1} parent=1 // loop_pre_header
      _
    $region26: #{tpu_custom_call.1} parent=1 // loop_header
      %s287 = sphi 0, %s291
      %p288 = scmp.ge.s32.totalorder %s287, 2
    $region27: #{tpu_custom_call.1} parent=1 // loop_header_branch
      %290 = sbr.rel (%p288) target = $region31
    $region28: #{tpu_custom_call.1} parent=1 // loop_body
      %s292 = smul.u32 %s287, 2
      %s293 = smul.addr %s292, 4
      %s294 = scalar_lea.vmem %s3, %s293
      %v295 = vld [vmem:[%s294] sm:$0xff]
      %297 = vset.pattern.permute.xlu0 0
      %298 = vperm.xlu0 %297, %v279
      %v299 = vpop.permute.xlu0 %298
      %v302 = vcombine.high %v295, %v295
      %v304 = vsel %vm112, %v285, 0
      %v306 = vsel %vm116, %v295, 0
      %v308 = vsel %vm116, %v302, 0
      %310 = vmatprep.subr.mxu0 0.0
      %311 = vmatpush1.msra.mxu0 0.0
      %312 = vmatprep.subr.mxu0 0.0
      %313 = vmatpush1.msra.mxu0 0.0
      %314 = vmatprep.subr.mxu0 0.0
      %315 = vmatpush1.msra.mxu0 0.0
      %316 = vmatprep.subr.mxu0 0.0
      %317 = vmatpush1.msra.mxu0 0.0
      %318 = vmatprep.subr.mxu0 0.0
      %319 = vmatpush1.msra.mxu0 0.0
      %320 = vmatprep.subr.mxu0 0.0
      %321 = vmatpush1.msra.mxu0 0.0
      %322 = vmatprep.subr.mxu0 0.0
      %323 = vmatpush1.msra.mxu0 0.0
      %324 = vmatprep.subr.mxu0 0.0
      %325 = vmatpush1.msra.mxu0 0.0
      %326 = vmatprep.subr.mxu0 0.0
      %327 = vmatpush1.msra.mxu0 0.0
      %328 = vmatprep.subr.mxu0 0.0
      %329 = vmatpush1.msra.mxu0 0.0
      %330 = vmatprep.subr.mxu0 0.0
      %331 = vmatpush1.msra.mxu0 0.0
      %332 = vmatprep.subr.mxu0 0.0
      %333 = vmatpush1.msra.mxu0 0.0
      %334 = vmatprep.subr.mxu0 0.0
      %335 = vmatpush1.msra.mxu0 0.0
      %336 = vmatprep.subr.mxu0 0.0
      %337 = vmatpush1.msra.mxu0 0.0
      %338 = vmatprep.subr.mxu0 0.0
      %339 = vmatpush1.msra.mxu0 0.0
      %340 = vmatprep.subr.mxu0 %v308
      %341 = vmatpush1.msra.mxu0 %v306
      %342 = vmatprep.subr.mxu0 0.0
      %343 = vmatpush2.msra.mxu0 0.0
      %344 = vmatprep.subr.mxu0 0.0
      %345 = vmatpush2.msra.mxu0 0.0
      %346 = vmatprep.subr.mxu0 0.0
      %347 = vmatpush2.msra.mxu0 0.0
      %348 = vmatprep.subr.mxu0 0.0
      %349 = vmatpush2.msra.mxu0 0.0
      %350 = vmatprep.subr.mxu0 0.0
      %351 = vmatpush2.msra.mxu0 0.0
      %352 = vmatprep.subr.mxu0 0.0
      %353 = vmatpush2.msra.mxu0 0.0
      %354 = vmatprep.subr.mxu0 0.0
      %355 = vmatpush2.msra.mxu0 0.0
      %356 = vmatprep.subr.mxu0 0.0
      %357 = vmatpush2.msra.mxu0 0.0
      %358 = vmatprep.subr.mxu0 0.0
      %359 = vmatpush2.msra.mxu0 0.0
      %360 = vmatprep.subr.mxu0 0.0
      %361 = vmatpush2.msra.mxu0 0.0
      %362 = vmatprep.subr.mxu0 0.0
      %363 = vmatpush2.msra.mxu0 0.0
      %364 = vmatprep.subr.mxu0 0.0
      %365 = vmatpush2.msra.mxu0 0.0
      %366 = vmatprep.subr.mxu0 0.0
      %367 = vmatpush2.msra.mxu0 0.0
      %368 = vmatprep.subr.mxu0 0.0
      %369 = vmatpush2.msra.mxu0 0.0
      %370 = vmatprep.subr.mxu0 0.0
      %371 = vmatpush2.msra.mxu0 0.0
      %372 = vmatprep.subr.mxu0 0.0
      %373 = vmatpush2.msra.mxu0 0.0
      %374 = vmatprep.mubr.f32.mxu0 0.0
      %375 = vmatmul.mubr.f32.gmra.mxu0 %v304
      %v376 = vpop.f32.mrf.mxu0
      %v377 = vadd.f32 %v299, %v376
      %v378 = vpop.f32.mrf.mxu0
      %v379 = vadd.f32 %v299, %v378
      %380 = vdwg.mxu0
      %v381 = vmax.f32 %v377, -1.0
      %v382 = vmax.f32 %v379, -1.0
      %v383 = vmin.f32 %v381, 1.0
      %v384 = vmin.f32 %v382, 1.0
      %s385 = smul.addr %s292, 8
      %s386 = scalar_lea.vmem [#allocation2], %s385
      %387 = vst [vmem:[%s386] sm:$0xff] %v383
      %388 = vst [vmem:[%s386 + $0x8] sm:$0xff] %v384
    $region29: #{tpu_custom_call.1} parent=1 // loop_footer
      %s291 = sadd.s32 1, %s287
    $region30: #{tpu_custom_call.1} parent=1 // loop_footer_branch
      %286 = sbr.rel target = $region26
    $region31: #{tpu_custom_call.1} parent=1 // loop_exit
      _
    // Predicated region
    $region32: #{tpu_custom_call.1} parent=1 // pred_check
      _
    $region33: #{tpu_custom_call.1} parent=1 // pred_check_branch
      %390 = sbr.rel (0) target = $region35
    $region34: #{tpu_custom_call.1} parent=1 // pred_region
      %s392 = ssub.s32 512, 512
      %393 = vsyncadd [#allocation3], %s392
      %s394 = sshll.u32 [#allocation2], 4
      %s395 = int_to_ptr.vmem [resolvable:$true] %s394
      %400 = dma.vmem_to_hbm [thread:$0]  %s395, 512, %s4, [#allocation3], 256, 256, 16
    $region35: #{tpu_custom_call.1} parent=1 // pred_fallthru
      _
    // Predicated region
    $region36: #{tpu_custom_call.1} parent=1 // pred_check
      _
    $region37: #{tpu_custom_call.1} parent=1 // pred_check_branch
      %402 = sbr.rel (0) target = $region39
    $region38: #{tpu_custom_call.1} parent=1 // pred_region
      %403 = dma.done [#allocation3], 512
    $region39: #{tpu_custom_call.1} parent=1 // pred_fallthru
      _
    %404 = vsyncpa [#allocation3], 1

// kernel: tpu_custom_call.1
$region0: #{tpu_custom_call.1}
  #allocation0 [shape = 'u32[]', space=smem, size = 0x4, offset = 0x4, fixed_abs, tag = 'smem constant byte address 0x4 - core index']
  #allocation1 [shape = 'u32[144,128]{1,0:T(1,128)}', space=vmem, size = 0x12000, scoped, tag = 'internal scratch']
  %s0 = inlined_call_operand.hbm [shape: f32[2,4,256], index: 0, kind: input, shape index: {}]
  %s1 = inlined_call_operand.hbm [shape: f32[2,4,4], index: 1, kind: output, shape index: {0}]
  %s2 = inlined_call_operand.vmem [shape: f32[2,4,1], index: 2, kind: output, shape index: {1}]
  %3 = xla_tuple %s1, %s2
  %s4 = sld [smem:[#allocation0]]
  $region53: #{tpu_custom_call.1} parent=0
    _
  %s6 = ssub.s32 1, %s4
  %s7 = scalar_select 0, %s6, %s4
  $region1: #{tpu_custom_call.1} parent=0
    #allocation2 [shape = 'u8[8192]{0}', space=vmem, size = 0x2000, scoped, tag = 'input window, operand 0']
    #allocation3 [shape = 's32[2]{0}', space=sflag, size = 0x8, scoped, tag = 'scoped memory for tpu_custom_call.1']
    #allocation4 [shape = 's32[2]{0}', space=sflag, size = 0x8, scoped, tag = 'scoped memory for tpu_custom_call.1']
    #allocation5 [shape = 'u8[4096]{0}', space=vmem, size = 0x1000, scoped, tag = 'output window, operand 0']
    %8 = vsyncpa [#allocation3], 0
    %s9 = scalar_lea.sflag [#allocation3], 1
    %10 = vsyncpa %s9, 0
    %11 = vsyncpa [#allocation4], 0
    %s12 = scalar_lea.sflag [#allocation4], 1
    %13 = vsyncpa %s12, 0
    loop: start=0, step=1, limit=4
    $region2: #{tpu_custom_call.1} parent=1 // loop_pre_header
      _
    $region3: #{tpu_custom_call.1} parent=1 // loop_header
      %s15 = sphi 0, %s19
      %p16 = scmp.ge.s32.totalorder %s15, 4
      %s22 = sphi 0, %s34
      %s23 = sphi 0, %s30
      %s24 = sphi 0, %s22
      %s25 = sphi 0, %s23
      %s26 = sphi 0, %s24
      %s27 = sphi 0, %s25
      %s39 = sphi 0, %s41
      %s42 = sphi 0, %s39
      %s43 = sphi 0, %s42
      %s59 = sphi 0, %s43
      %s65 = sphi 0, %s67
      %s68 = sphi 0, %s65
      %s69 = sphi 0, %s68
      %s85 = sphi 0, %s69
      %s91 = sphi 0, %s93
      %s94 = sphi 0, %s91
      %s95 = sphi 0, %s94
      %s111 = sphi 0, %s95
    $region4: #{tpu_custom_call.1} parent=1 // loop_header_branch
      %18 = sbr.rel (%p16) target = $region8
    $region5: #{tpu_custom_call.1} parent=1 // loop_body
      %s20 = ssub.s32 %s15, 1
      %s21 = ssub.s32 %s15, 2
      %s28 = sadd.s32 1, %s23
      %p29 = scmp.ge.s32.totalorder %s28, 1
      %s30 = scalar_select %p29, 0, %s28
      %s31 = sadd.s32 1, %s22
      %s32 = scalar_select %p29, %s31, %s22
      %p33 = scmp.ge.s32.totalorder %s32, 2
      %s34 = scalar_select %p33, 0, %s32
      %s35 = ssub.s32 %s22, %s34
      %s36 = ssub.s32 %s23, %s30
      %s37 = sor.u32 %s35, %s36
      %p38 = scmp.eq.s32.totalorder %s37, 0
      %s40 = sadd.s32 %s39, 1
      %s41 = scalar_select %p38, %s39, %s40
      %p44 = pneg %p38
      %p45 = scmp.eq.s32.totalorder %s15, 1
      %p46 = por %p44, %p45
      %p47 = scmp.ne.s32.totalorder %s39, %s42
      %p48 = scmp.eq.s32.totalorder %s15, 0
      %p49 = por %p47, %p48
      %p50 = scmp.ne.s32.totalorder %s39, %s42
      %p51 = scmp.eq.s32.totalorder %s20, 1
      %p52 = por %p50, %p51
      %p53 = scmp.ne.s32.totalorder %s42, %s43
      %p54 = scmp.eq.s32.totalorder %s20, 0
      %p55 = por %p53, %p54
      %p56 = scmp.ne.s32.totalorder %s42, %s43
      %p57 = scmp.eq.s32.totalorder %s21, 1
      %p58 = por %p56, %p57
      %p60 = scmp.ne.s32.totalorder %s43, %s59
      %p61 = scmp.eq.s32.totalorder %s21, 0
      %p62 = por %p60, %p61
      %s63 = ssub.s32 %s22, %s34
      %p64 = scmp.eq.s32.totalorder %s63, 0
      %s66 = sadd.s32 %s65, 1
      %s67 = scalar_select %p64, %s65, %s66
      %p70 = pneg %p64
      %p71 = scmp.eq.s32.totalorder %s15, 1
      %p72 = por %p70, %p71
      %p73 = scmp.ne.s32.totalorder %s65, %s68
      %p74 = scmp.eq.s32.totalorder %s15, 0
      %p75 = por %p73, %p74
      %p76 = scmp.ne.s32.totalorder %s65, %s68
      %p77 = scmp.eq.s32.totalorder %s20, 1
      %p78 = por %p76, %p77
      %p79 = scmp.ne.s32.totalorder %s68, %s69
      %p80 = scmp.eq.s32.totalorder %s20, 0
      %p81 = por %p79, %p80
      %p82 = scmp.ne.s32.totalorder %s68, %s69
      %p83 = scmp.eq.s32.totalorder %s21, 1
      %p84 = por %p82, %p83
      %p86 = scmp.ne.s32.totalorder %s69, %s85
      %p87 = scmp.eq.s32.totalorder %s21, 0
      %p88 = por %p86, %p87
      %s89 = ssub.s32 %s22, %s34
      %p90 = scmp.eq.s32.totalorder %s89, 0
      %s92 = sadd.s32 %s91, 1
      %s93 = scalar_select %p90, %s91, %s92
      %p96 = pneg %p90
      %p97 = scmp.eq.s32.totalorder %s15, 1
      %p98 = por %p96, %p97
      %p99 = scmp.ne.s32.totalorder %s91, %s94
      %p100 = scmp.eq.s32.totalorder %s15, 0
      %p101 = por %p99, %p100
      %p102 = scmp.ne.s32.totalorder %s91, %s94
      %p103 = scmp.eq.s32.totalorder %s20, 1
      %p104 = por %p102, %p103
      %p105 = scmp.ne.s32.totalorder %s94, %s95
      %p106 = scmp.eq.s32.totalorder %s20, 0
      %p107 = por %p105, %p106
      %p108 = scmp.ne.s32.totalorder %s94, %s95
      %p109 = scmp.eq.s32.totalorder %s21, 1
      %p110 = por %p108, %p109
      %p112 = scmp.ne.s32.totalorder %s95, %s111
      %p113 = scmp.eq.s32.totalorder %s21, 0
      %p114 = por %p112, %p113
      %p115 = scmp.le.s32.totalorder 1, %s15
      %p116 = scmp.lt.s32.totalorder %s15, 3
      %p117 = pnand %p115, %p116
      %p118 = pneg %p117
      // Predicated region
      $region9: #{tpu_custom_call.1} parent=5 // pred_check
        _
      $region10: #{tpu_custom_call.1} parent=5 // pred_check_branch
        %120 = sbr.rel (%p117) target = $region12
      $region11: #{tpu_custom_call.1} parent=5 // pred_region
        %s121 = ssub.s32 %s15, 1
      $region12: #{tpu_custom_call.1} parent=5 // pred_fallthru
        _
      %p122 = scmp.lt.s32.totalorder %s15, 2
      // Predicated region
      $region13: #{tpu_custom_call.1} parent=5 // pred_check
        %p123 = pneg %p122
      $region14: #{tpu_custom_call.1} parent=5 // pred_check_branch
        %125 = sbr.rel (%p123) target = $region16
      $region15: #{tpu_custom_call.1} parent=5 // pred_region
        // Predicated region
        $region17: #{tpu_custom_call.1} parent=15 // pred_check
          %p126 = pneg %p49
        $region18: #{tpu_custom_call.1} parent=15 // pred_check_branch
          %128 = sbr.rel (%p126) target = $region20
        $region19: #{tpu_custom_call.1} parent=15 // pred_region
          %s129 = sand.u32 %s39, 1
          %s130 = scalar_lea.sflag [#allocation3], %s129
          %s131 = sand.u32 %s39, 1
          %s132 = smul.addr %s131, 8
          %s133 = scalar_lea.vmem [#allocation2], %s132
          %s134 = smul.u32 2, %s23
          %s136 = ssub.s32 128, 128
          %137 = vsyncadd %s130, %s136
          %s138 = smul.addr %s22, 2
          %s139 = sadd.s32 %s134, %s138
          %s140 = smul.addr %s139, 64
          %s141 = scalar_lea.hbm %s0, %s140
          %s143 = sshll.u32 %s133, 4
          %s144 = int_to_ptr.vmem [resolvable:$true] %s143
          %146 = dma.hbm_to_vmem [thread:$0]  %s141, 128, %s144, %s130
        $region20: #{tpu_custom_call.1} parent=15 // pred_fallthru
          _
      $region16: #{tpu_custom_call.1} parent=5 // pred_fallthru
        _
      %p147 = scmp.le.s32.totalorder 1, %s15
      %p148 = scmp.lt.s32.totalorder %s15, 3
      %p149 = pnand %p147, %p148
      %p150 = pneg %p149
      // Predicated region
      $region21: #{tpu_custom_call.1} parent=5 // pred_check
        _
      $region22: #{tpu_custom_call.1} parent=5 // pred_check_branch
        %152 = sbr.rel (%p149) target = $region24
      $region23: #{tpu_custom_call.1} parent=5 // pred_region
        %s153 = ssub.s32 %s15, 1
        %s154 = sand.u32 %s42, 1
        %s155 = scalar_lea.sflag [#allocation3], %s154
        %s156 = sand.u32 %s42, 1
        %s157 = smul.addr %s156, 8
        %s158 = scalar_lea.vmem [#allocation2], %s157
        // Predicated region
        $region25: #{tpu_custom_call.1} parent=23 // pred_check
          %p159 = pneg %p55
        $region26: #{tpu_custom_call.1} parent=23 // pred_check_branch
          %161 = sbr.rel (%p159) target = $region28
        $region27: #{tpu_custom_call.1} parent=23 // pred_region
          %162 = dma.done %s155, 128
        $region28: #{tpu_custom_call.1} parent=23 // pred_fallthru
          _
        %s163 = sand.u32 %s42, 1
        %s164 = scalar_lea.sflag [#allocation3], %s163
        %s165 = sand.u32 %s42, 1
        %s166 = smul.addr %s165, 8
        %s167 = scalar_lea.vmem [#allocation2], %s166
        %p168 = pneg %p55
        %p169 = pneg %p52
        %p170 = pneg %p81
        %p171 = pneg %p78
        %s172 = sand.u32 %s68, 1
        %s173 = scalar_lea.sflag [#allocation4], %s172
        %s174 = sand.u32 %s68, 1
        %s175 = smul.addr %s174, 4
        %s176 = scalar_lea.vmem [#allocation5], %s175
        %p177 = pneg %p107
        %p178 = pneg %p104
        %p179 = scmp.lt.s32.totalorder %s24, 1
        %s180 = scalar_select %p179, %s24, 1
        %s181 = smul.addr %s180, 4
        %s182 = scalar_lea.vmem %s2, %s181
        %s183 = smul.u32 2, %s25
        %p184 = scmp.lt.s32.totalorder %s24, 1
        %s185 = scalar_select %p184, %s24, 1
        %s186 = smul.addr %s185, 4
        %s187 = scalar_lea.vmem %s2, %s186
        %p188 = scmp.eq.s32.totalorder %s25, 0
        // Predicated region
        $region29: #{tpu_custom_call.1} parent=23 // pred_check
          %p189 = pneg %p188
        $region30: #{tpu_custom_call.1} parent=23 // pred_check_branch
          %191 = sbr.rel (%p189) target = $region32
        $region31: #{tpu_custom_call.1} parent=23 // pred_region
          %vm192 = vcmask 27648
          %193 = vst.msk [vmem:[%s176] sm:$0xf] %vm192, 0.0
          %vm194 = vcmask 3072
          %195 = vst.msk [vmem:[%s187] sm:$0xf] %vm194, 0.0
        $region32: #{tpu_custom_call.1} parent=23 // pred_fallthru
          _
        %v196 = vld [vmem:[%s158] sm:$0xff]
        %v197 = vld [vmem:[%s176] sm:$0xf]
        %v199 = vcombine.high %v196, %v196
        %201 = vmatprep.subr.mxu0 0.0
        %202 = vmatpush1.xpose.msra.mxu0 0.0
        %203 = vmatprep.subr.mxu0 0.0
        %204 = vmatpush1.xpose.msra.mxu0 0.0
        %205 = vmatprep.subr.mxu0 0.0
        %206 = vmatpush1.xpose.msra.mxu0 0.0
        %207 = vmatprep.subr.mxu0 0.0
        %208 = vmatpush1.xpose.msra.mxu0 0.0
        %209 = vmatprep.subr.mxu0 0.0
        %210 = vmatpush1.xpose.msra.mxu0 0.0
        %211 = vmatprep.subr.mxu0 0.0
        %212 = vmatpush1.xpose.msra.mxu0 0.0
        %213 = vmatprep.subr.mxu0 0.0
        %214 = vmatpush1.xpose.msra.mxu0 0.0
        %215 = vmatprep.subr.mxu0 0.0
        %216 = vmatpush1.xpose.msra.mxu0 0.0
        %217 = vmatprep.subr.mxu0 0.0
        %218 = vmatpush1.xpose.msra.mxu0 0.0
        %219 = vmatprep.subr.mxu0 0.0
        %220 = vmatpush1.xpose.msra.mxu0 0.0
        %221 = vmatprep.subr.mxu0 0.0
        %222 = vmatpush1.xpose.msra.mxu0 0.0
        %223 = vmatprep.subr.mxu0 0.0
        %224 = vmatpush1.xpose.msra.mxu0 0.0
        %225 = vmatprep.subr.mxu0 0.0
        %226 = vmatpush1.xpose.msra.mxu0 0.0
        %227 = vmatprep.subr.mxu0 0.0
        %228 = vmatpush1.xpose.msra.mxu0 0.0
        %229 = vmatprep.subr.mxu0 0.0
        %230 = vmatpush1.xpose.msra.mxu0 0.0
        %231 = vmatprep.subr.mxu0 %v199
        %232 = vmatpush1.xpose.msra.mxu0 %v196
        %233 = vmatprep.subr.mxu0 0.0
        %234 = vmatpush2.xpose.msra.mxu0 0.0
        %235 = vmatprep.subr.mxu0 0.0
        %236 = vmatpush2.xpose.msra.mxu0 0.0
        %237 = vmatprep.subr.mxu0 0.0
        %238 = vmatpush2.xpose.msra.mxu0 0.0
        %239 = vmatprep.subr.mxu0 0.0
        %240 = vmatpush2.xpose.msra.mxu0 0.0
        %241 = vmatprep.subr.mxu0 0.0
        %242 = vmatpush2.xpose.msra.mxu0 0.0
        %243 = vmatprep.subr.mxu0 0.0
        %244 = vmatpush2.xpose.msra.mxu0 0.0
        %245 = vmatprep.subr.mxu0 0.0
        %246 = vmatpush2.xpose.msra.mxu0 0.0
        %247 = vmatprep.subr.mxu0 0.0
        %248 = vmatpush2.xpose.msra.mxu0 0.0
        %249 = vmatprep.subr.mxu0 0.0
        %250 = vmatpush2.xpose.msra.mxu0 0.0
        %251 = vmatprep.subr.mxu0 0.0
        %252 = vmatpush2.xpose.msra.mxu0 0.0
        %253 = vmatprep.subr.mxu0 0.0
        %254 = vmatpush2.xpose.msra.mxu0 0.0
        %255 = vmatprep.subr.mxu0 0.0
        %256 = vmatpush2.xpose.msra.mxu0 0.0
        %257 = vmatprep.subr.mxu0 0.0
        %258 = vmatpush2.xpose.msra.mxu0 0.0
        %259 = vmatprep.subr.mxu0 0.0
        %260 = vmatpush2.xpose.msra.mxu0 0.0
        %261 = vmatprep.subr.mxu0 0.0
        %262 = vmatpush2.xpose.msra.mxu0 0.0
        %263 = vmatprep.subr.mxu0 0.0
        %264 = vmatpush2.xpose.msra.mxu0 0.0
        %265 = vmatprep.mubr.f32.mxu0 %v199
        %266 = vmatmul.mubr.f32.gmra.mxu0 %v196
        %v267 = vpop.f32.mrf.mxu0
        %v268 = vadd.f32 0.0, %v267
        %v269 = vpop.f32.mrf.mxu0
        %270 = vdwg.mxu0
        %v271 = vadd.f32 %v197, %v268
        %vm272 = vcmask 27648
        %273 = vst.msk [vmem:[%s176] sm:$0xf] %vm272, %v271
        %v274 = vld [vmem:[%s187] sm:$0xf]
        %vm275 = vcmask 1043456
        %v276 = vsel %vm275, %v196, 0.0
        %v277 = vsel %vm275, %v199, 0.0
        %v278 = vadd.f32 %v276, %v277
        %279 = vadd.xlane.f32.xlu0 %v278
        %v280 = vpop.xlane.xlu0 %279
        %v281 = vadd.f32 %v274, %v280
        %vm282 = vcmask 3072
        %283 = vst.msk [vmem:[%s187] sm:$0xf] %vm282, %v281
        %s284 = sand.u32 %s68, 1
        %s285 = scalar_lea.sflag [#allocation4], %s284
        %s286 = sand.u32 %s68, 1
        %s287 = smul.addr %s286, 4
        %s288 = scalar_lea.vmem [#allocation5], %s287
        %p289 = scmp.lt.s32.totalorder %s24, 1
        %s290 = scalar_select %p289, %s24, 1
        %s291 = smul.addr %s290, 4
        %s292 = scalar_lea.vmem %s2, %s291
        // Predicated region
        $region33: #{tpu_custom_call.1} parent=23 // pred_check
          %p293 = pneg %p78
        $region34: #{tpu_custom_call.1} parent=23 // pred_check_branch
          %295 = sbr.rel (%p293) target = $region36
        $region35: #{tpu_custom_call.1} parent=23 // pred_region
          %s297 = ssub.s32 64, 64
          %298 = vsyncadd %s285, %s297
          %s299 = smul.addr %s24, 64
          %s300 = scalar_lea.hbm %s1, %s299
          %s302 = sshll.u32 %s288, 4
          %s303 = int_to_ptr.vmem [resolvable:$true] %s302
          %305 = dma.vmem_to_hbm [thread:$0]  %s303, 64, %s300, %s285
        $region36: #{tpu_custom_call.1} parent=23 // pred_fallthru
          _
        // Predicated region
        $region37: #{tpu_custom_call.1} parent=23 // pred_check
          %p306 = pneg %p104
        $region38: #{tpu_custom_call.1} parent=23 // pred_check_branch
          %308 = sbr.rel (%p306) target = $region40
        $region39: #{tpu_custom_call.1} parent=23 // pred_region
          _
        $region40: #{tpu_custom_call.1} parent=23 // pred_fallthru
          _
      $region24: #{tpu_custom_call.1} parent=5 // pred_fallthru
        _
      %p309 = scmp.le.s32.totalorder 2, %s15
      // Predicated region
      $region41: #{tpu_custom_call.1} parent=5 // pred_check
        %p310 = pneg %p309
      $region42: #{tpu_custom_call.1} parent=5 // pred_check_branch
        %312 = sbr.rel (%p310) target = $region44
      $region43: #{tpu_custom_call.1} parent=5 // pred_region
        %s313 = ssub.s32 %s15, 2
        // Predicated region
        $region45: #{tpu_custom_call.1} parent=43 // pred_check
          %p314 = pneg %p84
        $region46: #{tpu_custom_call.1} parent=43 // pred_check_branch
          %316 = sbr.rel (%p314) target = $region48
        $region47: #{tpu_custom_call.1} parent=43 // pred_region
          %s317 = sand.u32 %s69, 1
          %s318 = scalar_lea.sflag [#allocation4], %s317
          %s319 = sand.u32 %s69, 1
          %s320 = smul.addr %s319, 4
          %s321 = scalar_lea.vmem [#allocation5], %s320
          %322 = dma.done %s318, 64
        $region48: #{tpu_custom_call.1} parent=43 // pred_fallthru
          _
        // Predicated region
        $region49: #{tpu_custom_call.1} parent=43 // pred_check
          %p323 = pneg %p110
        $region50: #{tpu_custom_call.1} parent=43 // pred_check_branch
          %325 = sbr.rel (%p323) target = $region52
        $region51: #{tpu_custom_call.1} parent=43 // pred_region
          %p326 = scmp.lt.s32.totalorder %s26, 1
          %s327 = scalar_select %p326, %s26, 1
          %s328 = smul.addr %s327, 4
          %s329 = scalar_lea.vmem %s2, %s328
        $region52: #{tpu_custom_call.1} parent=43 // pred_fallthru
          _
      $region44: #{tpu_custom_call.1} parent=5 // pred_fallthru
        _
    $region6: #{tpu_custom_call.1} parent=1 // loop_footer
      %s19 = sadd.s32 1, %s15
    $region7: #{tpu_custom_call.1} parent=1 // loop_footer_branch
      %14 = sbr.rel target = $region3
    $region8: #{tpu_custom_call.1} parent=1 // loop_exit
      _
    %330 = vsyncpa [#allocation3], 1
    %s331 = scalar_lea.sflag [#allocation3], 1
    %332 = vsyncpa %s331, 1
    %333 = vsyncpa [#allocation4], 1
    %s334 = scalar_lea.sflag [#allocation4], 1
    %335 = vsyncpa %s334, 1

</llo_original>
